<compile_context>
chip_gen: v5e
topology: v5e:2x2
jax: 0.10.0
libtpu: 0.0.40
codegen_flags: <defaults>
</compile_context>

<pallas_src>
import functools

import jax
import jax.numpy as jnp
from jax.experimental import pallas as pl
from jax.experimental.pallas import tpu as pltpu

LEAKY_SLOPE = 0.01                      # nn.LeakyReLU default negative_slope
_VMEM_BUDGET = 12 * 1024 * 1024         # stay under every chip's default scoped-VMEM limit


def _round_up(n, m):
    return ((n + m - 1) // m) * m


def _fused_mlp_kernel(x_ref, *refs, n_layers, slope):
    """Whole MLP for one batch tile.

    x_ref: (TM, D0p) bf16 tile.
    refs = (w0, b0, w1, b1, ..., w_{L-1}, b_{L-1}, o_ref);
      w_i: (Din_p, Dout_p) bf16 (VMEM-resident), b_i: (1, Dout_p) f32.
    Matmuls feed the MXU with bf16 operands + f32 accumulation; bias add and LeakyReLU
    run on the f32 accumulator (safe on v5e's no-bf16 VPU). The Python loop is a static
    unroll over layers, so intermediates stay in vregs only.
    """
    o_ref = refs[-1]
    h = x_ref[...]
    for i in range(n_layers):
        w = refs[2 * i][...]
        b = refs[2 * i + 1][...]
        y = jnp.dot(h.astype(jnp.bfloat16), w, preferred_element_type=jnp.float32)
        y = y + b  # (1, Dout_p) broadcasts over the batch tile
        if i != n_layers - 1:
            y = jnp.where(y >= 0, y, slope * y)  # LeakyReLU (dropout = identity in eval)
        h = y
    o_ref[...] = h.astype(o_ref.dtype)


def _vmem_footprint(tm, dims_p):
    """Rough VMEM bytes: resident weights/biases + double-buffered I/O tiles + working set."""
    w = sum(dims_p[i] * dims_p[i + 1] * 2 for i in range(len(dims_p) - 1))   # bf16 weights
    b = sum(8 * dims_p[i + 1] * 4 for i in range(len(dims_p) - 1))           # padded f32 biases
    x_t = 2 * tm * dims_p[0] * 2          # double-buffered bf16 input tile
    o_t = 2 * tm * dims_p[-1] * 4         # double-buffered f32 output tile
    work = 2 * tm * max(dims_p) * 4       # f32 intermediates / accumulator headroom
    return w + b + x_t + o_t + work


@functools.partial(jax.jit, static_argnames=("tm_target",))
def mlp_forward(x, params, *, tm_target=512):
    """x: (B, dim[0]) f32; params: list of (W (Din, Dout) f32, b (Dout,) f32)."""
    B, d_in = x.shape
    n_layers = len(params)
    dims = [d_in] + [w.shape[1] for w, _ in params]
    dims_p = [_round_up(d, 128) for d in dims]  # lane-dense padding

    # Pad weights/biases to 128-lane multiples once; store weights in bf16 (MXU-native,
    # halves weight DMA bytes). Zero padding keeps the math identical on the real slice.
    # TODO(synk): if resident weights alone exceed the VMEM budget, a K-tiled variant is needed.
    wb = []
    for i, (w, b) in enumerate(params):
        wp = jnp.zeros((dims_p[i], dims_p[i + 1]), jnp.bfloat16)
        wp = wp.at[: dims[i], : dims[i + 1]].set(w.astype(jnp.bfloat16))
        bp = jnp.zeros((1, dims_p[i + 1]), jnp.float32)
        bp = bp.at[0, : dims[i + 1]].set(b.astype(jnp.float32))
        wb += [wp, bp]

    # Tile only the batch axis; large tiles amortize the ~0.35us/step overhead, shrunk if
    # the resident-weight + tile footprint would blow the default scoped-VMEM limit.
    tm = min(tm_target, _round_up(B, 8))
    while tm > 8 and _vmem_footprint(tm, dims_p) > _VMEM_BUDGET:
        tm = max(8, tm // 2)
    b_pad = _round_up(B, tm)

    # Input shipped in bf16 (exactly what the kernel would cast to before the first matmul).
    xp = jnp.zeros((b_pad, dims_p[0]), jnp.bfloat16)
    xp = xp.at[:B, :d_in].set(x.astype(jnp.bfloat16))

    grid = (b_pad // tm,)
    in_specs = [pl.BlockSpec((tm, dims_p[0]), lambda i: (i, 0))]
    for li in range(n_layers):
        # Constant block index -> Pallas keeps these VMEM-resident (no re-DMA per step).
        in_specs.append(pl.BlockSpec((dims_p[li], dims_p[li + 1]), lambda i: (0, 0)))
        in_specs.append(pl.BlockSpec((1, dims_p[li + 1]), lambda i: (0, 0)))
    out_spec = pl.BlockSpec((tm, dims_p[-1]), lambda i: (i, 0))

    kernel = functools.partial(_fused_mlp_kernel, n_layers=n_layers, slope=LEAKY_SLOPE)
    out_padded = pl.pallas_call(
        kernel,
        out_shape=jax.ShapeDtypeStruct((b_pad, dims_p[-1]), jnp.float32),
        grid=grid,
        in_specs=in_specs,
        out_specs=out_spec,
        compiler_params=pltpu.CompilerParams(dimension_semantics=("parallel",)),
    )(xp, *wb)
    return out_padded[:B, : dims[-1]]


def init_mlp_params(key, dim):
    """Deterministic init mimicking nn.Linear: U(-1/sqrt(fan_in), 1/sqrt(fan_in))."""
    params = []
    for i in range(len(dim) - 1):
        fan_in, fan_out = dim[i], dim[i + 1]
        key, kw, kb = jax.random.split(key, 3)
        bound = 1.0 / float(fan_in) ** 0.5
        w = jax.random.uniform(kw, (fan_in, fan_out), jnp.float32, -bound, bound)
        b = jax.random.uniform(kb, (fan_out,), jnp.float32, -bound, bound)
        params.append((w, b))
    return params


def mlp_reference_f32(x, params):
    """Pure-f32 JAX reference (module semantics, eval mode)."""
    h = x
    for i, (w, b) in enumerate(params):
        h = h @ w + b
        if i != len(params) - 1:
            h = jnp.where(h >= 0, h, LEAKY_SLOPE * h)
    return h


def mlp_reference_bf16(x, params):
    """Reference matching the kernel numerics: bf16 MXU operands, f32 accumulate/epilogue."""
    h = x.astype(jnp.float32)
    for i, (w, b) in enumerate(params):
        h = jnp.dot(h.astype(jnp.bfloat16), w.astype(jnp.bfloat16),
                    preferred_element_type=jnp.float32) + b
        if i != len(params) - 1:
            h = jnp.where(h >= 0, h, LEAKY_SLOPE * h)
    return h


if __name__ == "__main__":
    key = jax.random.PRNGKey(0)
    dim = [32, 64, 48, 16]   # MLP(dim=[32, 64, 48, 16], dp_ratio=0.1), eval mode
    batch = 8

    kx, kp = jax.random.split(key)
    x = jax.random.normal(kx, (batch, dim[0]), jnp.float32)
    params = init_mlp_params(kp, dim)

    out = jax.block_until_ready(mlp_forward(x, params))
    assert out.shape == (batch, dim[-1]), out.shape

    ref_bf16 = mlp_reference_bf16(x, params)   # same numerics as kernel
    ref_f32 = mlp_reference_f32(x, params)     # module-semantics sanity check
    assert jnp.allclose(out, ref_bf16, atol=1e-4, rtol=1e-4), "mismatch vs bf16-matched reference"
    assert jnp.allclose(out, ref_f32, atol=5e-2, rtol=5e-2), "mismatch vs f32 reference"

    print("KERNEL_OK")
</pallas_src>

<mosaic_0001>
module attributes {stable_mosaic.version = 11 : i64} {
  func.func @_fused_mlp_kernel(%arg0: i32, %arg1: memref<8x128xbf16, #tpu.memory_space<vmem>>, %arg2: memref<128x128xbf16, #tpu.memory_space<vmem>>, %arg3: memref<1x128xf32, #tpu.memory_space<vmem>>, %arg4: memref<128x128xbf16, #tpu.memory_space<vmem>>, %arg5: memref<1x128xf32, #tpu.memory_space<vmem>>, %arg6: memref<128x128xbf16, #tpu.memory_space<vmem>>, %arg7: memref<1x128xf32, #tpu.memory_space<vmem>>, %arg8: memref<8x128xf32, #tpu.memory_space<vmem>>) attributes {dimension_semantics = [#tpu.dimension_semantics<parallel>], iteration_bounds = array<i64: 1>, scalar_prefetch = 0 : i64, scratch_operands = 0 : i64, tpu.core_type = #tpu.core_type<tc>, window_params = [{transform_indices = @transform_0, window_bounds = array<i64: 8, 128>}, {pipeline_mode = #tpu.pipeline_mode<synchronous>, transform_indices = @transform_1, window_bounds = array<i64: 128, 128>}, {pipeline_mode = #tpu.pipeline_mode<synchronous>, transform_indices = @transform_2, window_bounds = array<i64: 1, 128>}, {pipeline_mode = #tpu.pipeline_mode<synchronous>, transform_indices = @transform_3, window_bounds = array<i64: 128, 128>}, {pipeline_mode = #tpu.pipeline_mode<synchronous>, transform_indices = @transform_4, window_bounds = array<i64: 1, 128>}, {pipeline_mode = #tpu.pipeline_mode<synchronous>, transform_indices = @transform_5, window_bounds = array<i64: 128, 128>}, {pipeline_mode = #tpu.pipeline_mode<synchronous>, transform_indices = @transform_6, window_bounds = array<i64: 1, 128>}, {transform_indices = @transform_7, window_bounds = array<i64: 8, 128>}]} {
    %c0 = arith.constant 0 : index
    %c0_0 = arith.constant 0 : index
    %0 = vector.load %arg1[%c0, %c0_0] : memref<8x128xbf16, #tpu.memory_space<vmem>>, vector<8x128xbf16>
    %c0_1 = arith.constant 0 : index
    %c0_2 = arith.constant 0 : index
    %1 = vector.load %arg2[%c0_1, %c0_2] : memref<128x128xbf16, #tpu.memory_space<vmem>>, vector<128x128xbf16>
    %c0_3 = arith.constant 0 : index
    %c0_4 = arith.constant 0 : index
    %2 = vector.load %arg3[%c0_3, %c0_4] : memref<1x128xf32, #tpu.memory_space<vmem>>, vector<1x128xf32>
    %cst = arith.constant dense<0.000000e+00> : vector<8x128xf32>
    %3 = tpu.matmul %0, %1, %cst {dimension_numbers = #tpu.dot_dimension_numbers<[1], [0], [0], [1], [0, 0, 1, 1], [], []>} : vector<8x128xbf16>, vector<128x128xbf16>, vector<8x128xf32> -> vector<8x128xf32>
    %4 = vector.broadcast %2 : vector<1x128xf32> to vector<8x128xf32>
    %5 = arith.addf %3, %4 : vector<8x128xf32>
    %cst_5 = arith.constant 0.000000e+00 : f32
    %6 = vector.broadcast %cst_5 : f32 to vector<8x128xf32>
    %7 = arith.cmpf oge, %5, %6 : vector<8x128xf32>
    %cst_6 = arith.constant 0.00999999977 : f32
    %8 = vector.broadcast %cst_6 : f32 to vector<8x128xf32>
    %9 = arith.mulf %8, %5 : vector<8x128xf32>
    %10 = arith.select %7, %5, %9 : vector<8x128xi1>, vector<8x128xf32>
    %c0_7 = arith.constant 0 : index
    %c0_8 = arith.constant 0 : index
    %11 = vector.load %arg4[%c0_7, %c0_8] : memref<128x128xbf16, #tpu.memory_space<vmem>>, vector<128x128xbf16>
    %c0_9 = arith.constant 0 : index
    %c0_10 = arith.constant 0 : index
    %12 = vector.load %arg5[%c0_9, %c0_10] : memref<1x128xf32, #tpu.memory_space<vmem>>, vector<1x128xf32>
    %13 = arith.truncf %10 : vector<8x128xf32> to vector<8x128xbf16>
    %cst_11 = arith.constant dense<0.000000e+00> : vector<8x128xf32>
    %14 = tpu.matmul %13, %11, %cst_11 {dimension_numbers = #tpu.dot_dimension_numbers<[1], [0], [0], [1], [0, 0, 1, 1], [], []>} : vector<8x128xbf16>, vector<128x128xbf16>, vector<8x128xf32> -> vector<8x128xf32>
    %15 = vector.broadcast %12 : vector<1x128xf32> to vector<8x128xf32>
    %16 = arith.addf %14, %15 : vector<8x128xf32>
    %cst_12 = arith.constant 0.000000e+00 : f32
    %17 = vector.broadcast %cst_12 : f32 to vector<8x128xf32>
    %18 = arith.cmpf oge, %16, %17 : vector<8x128xf32>
    %cst_13 = arith.constant 0.00999999977 : f32
    %19 = vector.broadcast %cst_13 : f32 to vector<8x128xf32>
    %20 = arith.mulf %19, %16 : vector<8x128xf32>
    %21 = arith.select %18, %16, %20 : vector<8x128xi1>, vector<8x128xf32>
    %c0_14 = arith.constant 0 : index
    %c0_15 = arith.constant 0 : index
    %22 = vector.load %arg6[%c0_14, %c0_15] : memref<128x128xbf16, #tpu.memory_space<vmem>>, vector<128x128xbf16>
    %c0_16 = arith.constant 0 : index
    %c0_17 = arith.constant 0 : index
    %23 = vector.load %arg7[%c0_16, %c0_17] : memref<1x128xf32, #tpu.memory_space<vmem>>, vector<1x128xf32>
    %24 = arith.truncf %21 : vector<8x128xf32> to vector<8x128xbf16>
    %cst_18 = arith.constant dense<0.000000e+00> : vector<8x128xf32>
    %25 = tpu.matmul %24, %22, %cst_18 {dimension_numbers = #tpu.dot_dimension_numbers<[1], [0], [0], [1], [0, 0, 1, 1], [], []>} : vector<8x128xbf16>, vector<128x128xbf16>, vector<8x128xf32> -> vector<8x128xf32>
    %26 = vector.broadcast %23 : vector<1x128xf32> to vector<8x128xf32>
    %27 = arith.addf %25, %26 : vector<8x128xf32>
    %c0_19 = arith.constant 0 : index
    %c0_20 = arith.constant 0 : index
    %28 = vector.load %arg8[%c0_19, %c0_20] : memref<8x128xf32, #tpu.memory_space<vmem>>, vector<8x128xf32>
    tpu.vector_store %arg8[%c0_19, %c0_20], %27 {strides = array<i32>} : memref<8x128xf32, #tpu.memory_space<vmem>>, vector<8x128xf32>,
    return
  }
  func.func @transform_0(%arg0: i32) -> (i32, i32) {
    %c0_i32 = arith.constant 0 : i32
    %c0_i32_0 = arith.constant 0 : i32
    return %arg0, %c0_i32 : i32, i32
  }
  func.func @transform_1(%arg0: i32) -> (i32, i32) {
    %c0_i32 = arith.constant 0 : i32
    %c0_i32_0 = arith.constant 0 : i32
    %c0_i32_1 = arith.constant 0 : i32
    return %c0_i32, %c0_i32_0 : i32, i32
  }
  func.func @transform_2(%arg0: i32) -> (i32, i32) {
    %c0_i32 = arith.constant 0 : i32
    %c0_i32_0 = arith.constant 0 : i32
    %c0_i32_1 = arith.constant 0 : i32
    return %c0_i32, %c0_i32_0 : i32, i32
  }
  func.func @transform_3(%arg0: i32) -> (i32, i32) {
    %c0_i32 = arith.constant 0 : i32
    %c0_i32_0 = arith.constant 0 : i32
    %c0_i32_1 = arith.constant 0 : i32
    return %c0_i32, %c0_i32_0 : i32, i32
  }
  func.func @transform_4(%arg0: i32) -> (i32, i32) {
    %c0_i32 = arith.constant 0 : i32
    %c0_i32_0 = arith.constant 0 : i32
    %c0_i32_1 = arith.constant 0 : i32
    return %c0_i32, %c0_i32_0 : i32, i32
  }
  func.func @transform_5(%arg0: i32) -> (i32, i32) {
    %c0_i32 = arith.constant 0 : i32
    %c0_i32_0 = arith.constant 0 : i32
    %c0_i32_1 = arith.constant 0 : i32
    return %c0_i32, %c0_i32_0 : i32, i32
  }
  func.func @transform_6(%arg0: i32) -> (i32, i32) {
    %c0_i32 = arith.constant 0 : i32
    %c0_i32_0 = arith.constant 0 : i32
    %c0_i32_1 = arith.constant 0 : i32
    return %c0_i32, %c0_i32_0 : i32, i32
  }
  func.func @transform_7(%arg0: i32) -> (i32, i32) {
    %c0_i32 = arith.constant 0 : i32
    %c0_i32_0 = arith.constant 0 : i32
    return %arg0, %c0_i32 : i32, i32
  }
}

</mosaic_0001>

<llo_original>
// kernel: mlp_forward.1
$region0: #{mlp_forward.1}
  #allocation0 [shape = 'u32[]', space=smem, size = 0x4, offset = 0x4, fixed_abs, tag = 'smem constant byte address 0x4 - core index']
  #allocation1 [shape = 'u32[72,128]{1,0:T(1,128)}', space=vmem, size = 0x9000, scoped, tag = 'internal scratch']
  %s0 = inlined_call_operand.vmem [shape: bf16[8,128], index: 0, kind: input, shape index: {}]
  %s1 = inlined_call_operand.vmem [shape: bf16[128,128], index: 1, kind: input, shape index: {}]
  %s2 = inlined_call_operand.vmem [shape: f32[1,128], index: 2, kind: input, shape index: {}]
  %s3 = inlined_call_operand.vmem [shape: bf16[128,128], index: 3, kind: input, shape index: {}]
  %s4 = inlined_call_operand.vmem [shape: f32[1,128], index: 4, kind: input, shape index: {}]
  %s5 = inlined_call_operand.vmem [shape: bf16[128,128], index: 5, kind: input, shape index: {}]
  %s6 = inlined_call_operand.vmem [shape: f32[1,128], index: 6, kind: input, shape index: {}]
  %s7 = inlined_call_operand.hbm [shape: f32[8,128], index: 7, kind: output, shape index: {}]
  %s8 = sld [smem:[#allocation0]]
  $region38: #{mlp_forward.1} parent=0
    _
  %s10 = ssub.s32 1, %s8
  %s11 = scalar_select 0, %s10, %s8
  $region1: #{mlp_forward.1} parent=0
    #allocation2 [shape = 'u8[4096]{0}', space=vmem, size = 0x1000, scoped, tag = 'output window, operand 0, single buffered']
    #allocation3 [shape = 's32[1]{0}', space=sflag, size = 0x4, scoped, tag = 'scoped memory for mlp_forward.1']
    %12 = vsyncpa [#allocation3], 0
    // Predicated region
    $region2: #{mlp_forward.1} parent=1 // pred_check
      _
    $region3: #{mlp_forward.1} parent=1 // pred_check_branch
      %14 = sbr.rel (0) target = $region5
    $region4: #{mlp_forward.1} parent=1 // pred_region
      _
    $region5: #{mlp_forward.1} parent=1 // pred_fallthru
      _
    // Predicated region
    $region6: #{mlp_forward.1} parent=1 // pred_check
      _
    $region7: #{mlp_forward.1} parent=1 // pred_check_branch
      %16 = sbr.rel (0) target = $region9
    $region8: #{mlp_forward.1} parent=1 // pred_region
      _
    $region9: #{mlp_forward.1} parent=1 // pred_fallthru
      _
    // Predicated region
    $region10: #{mlp_forward.1} parent=1 // pred_check
      _
    $region11: #{mlp_forward.1} parent=1 // pred_check_branch
      %18 = sbr.rel (0) target = $region13
    $region12: #{mlp_forward.1} parent=1 // pred_region
      _
    $region13: #{mlp_forward.1} parent=1 // pred_fallthru
      _
    // Predicated region
    $region14: #{mlp_forward.1} parent=1 // pred_check
      _
    $region15: #{mlp_forward.1} parent=1 // pred_check_branch
      %20 = sbr.rel (0) target = $region17
    $region16: #{mlp_forward.1} parent=1 // pred_region
      _
    $region17: #{mlp_forward.1} parent=1 // pred_fallthru
      _
    // Predicated region
    $region18: #{mlp_forward.1} parent=1 // pred_check
      _
    $region19: #{mlp_forward.1} parent=1 // pred_check_branch
      %22 = sbr.rel (0) target = $region21
    $region20: #{mlp_forward.1} parent=1 // pred_region
      _
    $region21: #{mlp_forward.1} parent=1 // pred_fallthru
      _
    // Predicated region
    $region22: #{mlp_forward.1} parent=1 // pred_check
      _
    $region23: #{mlp_forward.1} parent=1 // pred_check_branch
      %24 = sbr.rel (0) target = $region25
    $region24: #{mlp_forward.1} parent=1 // pred_region
      _
    $region25: #{mlp_forward.1} parent=1 // pred_fallthru
      _
    // Predicated region
    $region26: #{mlp_forward.1} parent=1 // pred_check
      _
    $region27: #{mlp_forward.1} parent=1 // pred_check_branch
      %26 = sbr.rel (0) target = $region29
    $region28: #{mlp_forward.1} parent=1 // pred_region
      _
    $region29: #{mlp_forward.1} parent=1 // pred_fallthru
      _
    %v27 = vld [vmem:[%s0] sm:$0xf]
    %v28 = vld [vmem:[%s1] sm:$0xf]
    %v29 = vld [vmem:[%s1 + $0x4] sm:$0xf]
    %v30 = vld [vmem:[%s1 + $0x8] sm:$0xf]
    %v31 = vld [vmem:[%s1 + $0xc] sm:$0xf]
    %v32 = vld [vmem:[%s1 + $0x10] sm:$0xf]
    %v33 = vld [vmem:[%s1 + $0x14] sm:$0xf]
    %v34 = vld [vmem:[%s1 + $0x18] sm:$0xf]
    %v35 = vld [vmem:[%s1 + $0x1c] sm:$0xf]
    %v36 = vld [vmem:[%s1 + $0x20] sm:$0xf]
    %v37 = vld [vmem:[%s1 + $0x24] sm:$0xf]
    %v38 = vld [vmem:[%s1 + $0x28] sm:$0xf]
    %v39 = vld [vmem:[%s1 + $0x2c] sm:$0xf]
    %v40 = vld [vmem:[%s1 + $0x30] sm:$0xf]
    %v41 = vld [vmem:[%s1 + $0x34] sm:$0xf]
    %v42 = vld [vmem:[%s1 + $0x38] sm:$0xf]
    %v43 = vld [vmem:[%s1 + $0x3c] sm:$0xf]
    %v44 = vld [vmem:[%s2] sm:$0x1]
    %v46 = vperm.slane %v44, 0
    %v64 = vunpack.c.l.b16 %v28
    %v65 = vunpack.c.l.b16 %v29
    %v66 = vunpack.c.l.b16 %v30
    %v67 = vunpack.c.l.b16 %v31
    %v68 = vunpack.c.l.b16 %v32
    %v69 = vunpack.c.l.b16 %v33
    %v70 = vunpack.c.l.b16 %v34
    %v71 = vunpack.c.l.b16 %v35
    %v72 = vunpack.c.l.b16 %v36
    %v73 = vunpack.c.l.b16 %v37
    %v74 = vunpack.c.l.b16 %v38
    %v75 = vunpack.c.l.b16 %v39
    %v76 = vunpack.c.l.b16 %v40
    %v77 = vunpack.c.l.b16 %v41
    %v78 = vunpack.c.l.b16 %v42
    %v79 = vunpack.c.l.b16 %v43
    %v80 = vpack.c.b16 %v65, %v64
    %v81 = vpack.c.b16 %v67, %v66
    %v82 = vpack.c.b16 %v69, %v68
    %v83 = vpack.c.b16 %v71, %v70
    %v84 = vpack.c.b16 %v73, %v72
    %v85 = vpack.c.b16 %v75, %v74
    %v86 = vpack.c.b16 %v77, %v76
    %v87 = vpack.c.b16 %v79, %v78
    %96 = vmatpush.bf16.msra.mxu0 %v87
    %97 = vmatpush.bf16.msra.mxu0 %v86
    %98 = vmatpush.bf16.msra.mxu0 %v85
    %99 = vmatpush.bf16.msra.mxu0 %v84
    %100 = vmatpush.bf16.msra.mxu0 %v83
    %101 = vmatpush.bf16.msra.mxu0 %v82
    %102 = vmatpush.bf16.msra.mxu0 %v81
    %103 = vmatpush.bf16.msra.mxu0 %v80
    %104 = vmatmul.bf16.gmra.mxu0 %v27
    %v105 = vpop.f32.mrf.mxu0
    %v106 = vadd.f32 %v46, %v105
    %v107 = vpop.f32.mrf.mxu0
    %108 = vdwg.mxu0
    %vm109 = vcmp.ge.f32.partialorder %v106, 0.0
    %v110 = vmul.f32 %v106, 0.01
    %v111 = vsel %vm109, %v106, %v110
    %v112 = vld [vmem:[%s3] sm:$0xf]
    %v113 = vld [vmem:[%s3 + $0x4] sm:$0xf]
    %v114 = vld [vmem:[%s3 + $0x8] sm:$0xf]
    %v115 = vld [vmem:[%s3 + $0xc] sm:$0xf]
    %v116 = vld [vmem:[%s3 + $0x10] sm:$0xf]
    %v117 = vld [vmem:[%s3 + $0x14] sm:$0xf]
    %v118 = vld [vmem:[%s3 + $0x18] sm:$0xf]
    %v119 = vld [vmem:[%s3 + $0x1c] sm:$0xf]
    %v120 = vld [vmem:[%s3 + $0x20] sm:$0xf]
    %v121 = vld [vmem:[%s3 + $0x24] sm:$0xf]
    %v122 = vld [vmem:[%s3 + $0x28] sm:$0xf]
    %v123 = vld [vmem:[%s3 + $0x2c] sm:$0xf]
    %v124 = vld [vmem:[%s3 + $0x30] sm:$0xf]
    %v125 = vld [vmem:[%s3 + $0x34] sm:$0xf]
    %v126 = vld [vmem:[%s3 + $0x38] sm:$0xf]
    %v127 = vld [vmem:[%s3 + $0x3c] sm:$0xf]
    %v128 = vld [vmem:[%s4] sm:$0x1]
    %v129 = vpack.c.bf16 %v111, %v111
    %v131 = vperm.slane %v128, 0
    %v149 = vunpack.c.l.b16 %v112
    %v150 = vunpack.c.l.b16 %v113
    %v151 = vunpack.c.l.b16 %v114
    %v152 = vunpack.c.l.b16 %v115
    %v153 = vunpack.c.l.b16 %v116
    %v154 = vunpack.c.l.b16 %v117
    %v155 = vunpack.c.l.b16 %v118
    %v156 = vunpack.c.l.b16 %v119
    %v157 = vunpack.c.l.b16 %v120
    %v158 = vunpack.c.l.b16 %v121
    %v159 = vunpack.c.l.b16 %v122
    %v160 = vunpack.c.l.b16 %v123
    %v161 = vunpack.c.l.b16 %v124
    %v162 = vunpack.c.l.b16 %v125
    %v163 = vunpack.c.l.b16 %v126
    %v164 = vunpack.c.l.b16 %v127
    %v165 = vpack.c.b16 %v150, %v149
    %v166 = vpack.c.b16 %v152, %v151
    %v167 = vpack.c.b16 %v154, %v153
    %v168 = vpack.c.b16 %v156, %v155
    %v169 = vpack.c.b16 %v158, %v157
    %v170 = vpack.c.b16 %v160, %v159
    %v171 = vpack.c.b16 %v162, %v161
    %v172 = vpack.c.b16 %v164, %v163
    %181 = vmatpush.bf16.msra.mxu0 %v172
    %182 = vmatpush.bf16.msra.mxu0 %v171
    %183 = vmatpush.bf16.msra.mxu0 %v170
    %184 = vmatpush.bf16.msra.mxu0 %v169
    %185 = vmatpush.bf16.msra.mxu0 %v168
    %186 = vmatpush.bf16.msra.mxu0 %v167
    %187 = vmatpush.bf16.msra.mxu0 %v166
    %188 = vmatpush.bf16.msra.mxu0 %v165
    %189 = vmatmul.bf16.gmra.mxu0 %v129
    %v190 = vpop.f32.mrf.mxu0
    %v191 = vadd.f32 %v131, %v190
    %v192 = vpop.f32.mrf.mxu0
    %193 = vdwg.mxu0
    %vm194 = vcmp.ge.f32.partialorder %v191, 0.0
    %v195 = vmul.f32 %v191, 0.01
    %v196 = vsel %vm194, %v191, %v195
    %v197 = vld [vmem:[%s5] sm:$0xf]
    %v198 = vld [vmem:[%s5 + $0x4] sm:$0xf]
    %v199 = vld [vmem:[%s5 + $0x8] sm:$0xf]
    %v200 = vld [vmem:[%s5 + $0xc] sm:$0xf]
    %v201 = vld [vmem:[%s5 + $0x10] sm:$0xf]
    %v202 = vld [vmem:[%s5 + $0x14] sm:$0xf]
    %v203 = vld [vmem:[%s5 + $0x18] sm:$0xf]
    %v204 = vld [vmem:[%s5 + $0x1c] sm:$0xf]
    %v205 = vld [vmem:[%s5 + $0x20] sm:$0xf]
    %v206 = vld [vmem:[%s5 + $0x24] sm:$0xf]
    %v207 = vld [vmem:[%s5 + $0x28] sm:$0xf]
    %v208 = vld [vmem:[%s5 + $0x2c] sm:$0xf]
    %v209 = vld [vmem:[%s5 + $0x30] sm:$0xf]
    %v210 = vld [vmem:[%s5 + $0x34] sm:$0xf]
    %v211 = vld [vmem:[%s5 + $0x38] sm:$0xf]
    %v212 = vld [vmem:[%s5 + $0x3c] sm:$0xf]
    %v213 = vld [vmem:[%s6] sm:$0x1]
    %v214 = vpack.c.bf16 %v196, %v196
    %v216 = vperm.slane %v213, 0
    %v234 = vunpack.c.l.b16 %v197
    %v235 = vunpack.c.l.b16 %v198
    %v236 = vunpack.c.l.b16 %v199
    %v237 = vunpack.c.l.b16 %v200
    %v238 = vunpack.c.l.b16 %v201
    %v239 = vunpack.c.l.b16 %v202
    %v240 = vunpack.c.l.b16 %v203
    %v241 = vunpack.c.l.b16 %v204
    %v242 = vunpack.c.l.b16 %v205
    %v243 = vunpack.c.l.b16 %v206
    %v244 = vunpack.c.l.b16 %v207
    %v245 = vunpack.c.l.b16 %v208
    %v246 = vunpack.c.l.b16 %v209
    %v247 = vunpack.c.l.b16 %v210
    %v248 = vunpack.c.l.b16 %v211
    %v249 = vunpack.c.l.b16 %v212
    %v250 = vpack.c.b16 %v235, %v234
    %v251 = vpack.c.b16 %v237, %v236
    %v252 = vpack.c.b16 %v239, %v238
    %v253 = vpack.c.b16 %v241, %v240
    %v254 = vpack.c.b16 %v243, %v242
    %v255 = vpack.c.b16 %v245, %v244
    %v256 = vpack.c.b16 %v247, %v246
    %v257 = vpack.c.b16 %v249, %v248
    %266 = vmatpush.bf16.msra.mxu0 %v257
    %267 = vmatpush.bf16.msra.mxu0 %v256
    %268 = vmatpush.bf16.msra.mxu0 %v255
    %269 = vmatpush.bf16.msra.mxu0 %v254
    %270 = vmatpush.bf16.msra.mxu0 %v253
    %271 = vmatpush.bf16.msra.mxu0 %v252
    %272 = vmatpush.bf16.msra.mxu0 %v251
    %273 = vmatpush.bf16.msra.mxu0 %v250
    %274 = vmatmul.bf16.gmra.mxu0 %v214
    %v275 = vpop.f32.mrf.mxu0
    %v276 = vadd.f32 %v216, %v275
    %v277 = vpop.f32.mrf.mxu0
    %278 = vdwg.mxu0
    %279 = vst [vmem:[#allocation2] sm:$0xff] %v276
    // Predicated region
    $region30: #{mlp_forward.1} parent=1 // pred_check
      _
    $region31: #{mlp_forward.1} parent=1 // pred_check_branch
      %281 = sbr.rel (0) target = $region33
    $region32: #{mlp_forward.1} parent=1 // pred_region
      %283 = vsyncadd [#allocation3], 0
      %s285 = sshll.u32 [#allocation2], 4
      %s286 = int_to_ptr.vmem [resolvable:$true] %s285
      %s287 = sshll.u32 %s7, 4
      %s288 = int_to_ptr.hbm [resolvable:$true] %s287
      %290 = dma.vmem_to_hbm [thread:$0]  %s286, 128, %s288, [#allocation3]
    $region33: #{mlp_forward.1} parent=1 // pred_fallthru
      _
    // Predicated region
    $region34: #{mlp_forward.1} parent=1 // pred_check
      _
    $region35: #{mlp_forward.1} parent=1 // pred_check_branch
      %292 = sbr.rel (0) target = $region37
    $region36: #{mlp_forward.1} parent=1 // pred_region
      %294 = dma.done [#allocation3], 128
    $region37: #{mlp_forward.1} parent=1 // pred_fallthru
      _
    %295 = vsyncpa [#allocation3], 1

</llo_original>
